<compile_context>
chip_gen: v6e
topology: v6e:2x2x1
jax: 0.10.0
libtpu: 0.0.40
codegen_flags: <defaults>
</compile_context>

<pallas_src>
import jax
import jax.numpy as jnp
from jax.experimental import pallas as pl
from jax.experimental.pallas import tpu as pltpu


_VMEM_BUDGET = 44 << 20        # safe on v7x (64 MiB/TC physical) and v5e/v6e (128 MiB)
_TARGET_ACT_BLOCK = 8 << 20    # ~8 MiB activation blocks amortize per-step overhead
_MAX_BN = 128


# ----------------------------------------------------------------------------
# Kernels: global average pool over spatial + Linear + bias (fused)
# ----------------------------------------------------------------------------
def _head_kernel_nchw(x_ref, w_ref, b_ref, o_ref):
    # x_ref: (bn, C, HW) native dtype; w_ref: (C, Np); b_ref: (1, Np) f32; o_ref: (bn, Np)
    inv_hw = 1.0 / x_ref.shape[-1]
    pooled = jnp.sum(x_ref[...].astype(jnp.float32), axis=-1) * inv_hw      # (bn, C) f32
    y = jnp.dot(pooled, w_ref[...].astype(jnp.float32),
                preferred_element_type=jnp.float32)                         # MXU
    o_ref[...] = (y + b_ref[...]).astype(o_ref.dtype)


def _head_kernel_nhwc(x_ref, w_ref, b_ref, o_ref):
    # x_ref: (bn, HW, C): C on lanes -> dense DMA + sublane (VPU) spatial reduce.
    inv_hw = 1.0 / x_ref.shape[-2]
    pooled = jnp.sum(x_ref[...].astype(jnp.float32), axis=-2) * inv_hw      # (bn, C) f32
    y = jnp.dot(pooled, w_ref[...].astype(jnp.float32),
                preferred_element_type=jnp.float32)
    o_ref[...] = (y + b_ref[...]).astype(o_ref.dtype)


# ----------------------------------------------------------------------------
# One-time parameter prep (hoisted out of the per-call path)
# ----------------------------------------------------------------------------
def prepare_head_params(fc_w, fc_b):
    """fc_w: (num_classes, C), fc_b: (num_classes,).

    Returns (w_pad (C, Np), b_pad (1, Np) f32, num_classes) with Np a multiple of 128
    so the kernel's output store is a full-lane, unmasked vst.
    """
    num_classes, c = fc_w.shape
    np_ = pl.cdiv(num_classes, 128) * 128
    w_pad = jnp.zeros((c, np_), fc_w.dtype).at[:, :num_classes].set(fc_w.T)
    b_pad = jnp.zeros((1, np_), jnp.float32).at[0, :num_classes].set(
        fc_b.astype(jnp.float32))
    return w_pad, b_pad, num_classes


# ----------------------------------------------------------------------------
# Batch-tile selection (VMEM + megacore aware)
# ----------------------------------------------------------------------------
def _pick_bn(n, row_bytes, np_, w_bytes):
    if n <= 8:
        return n if n < 8 else 8
    resident = 2 * (w_bytes + np_ * 4)               # weight + bias buffers
    per_row = 2 * (row_bytes + np_ * 4)              # double-buffered act + out, per row
    bn_vmem = (_VMEM_BUDGET - resident) // per_row
    bn_tgt = max(8, _TARGET_ACT_BLOCK // row_bytes)  # ~8 MiB activation block
    bn = min(_MAX_BN, bn_vmem, bn_tgt)
    bn = max(8, (bn // 8) * 8)
    # Ensure >= 2 grid steps so a v7x megacore can shard the "parallel" batch axis.
    bn = min(bn, max(8, ((n - 1) // 8) * 8))
    return bn


# ----------------------------------------------------------------------------
# Forward
# ----------------------------------------------------------------------------
def resnet_head_forward(x, w_pad, b_pad, num_classes, *, channels_last=False):
    """x: (N, C, H, W) if channels_last=False (PyTorch NCHW), else (N, H, W, C).

    Returns logits (N, num_classes) == AdaptiveAvgPool2d(1) -> Flatten -> Linear.
    """
    if channels_last:
        n, h, w, c = x.shape
    else:
        n, c, h, w = x.shape
    hw = h * w
    np_ = w_pad.shape[1]
    assert w_pad.shape[0] == c and np_ % 128 == 0

    x_itemsize = jnp.dtype(x.dtype).itemsize
    w_itemsize = jnp.dtype(w_pad.dtype).itemsize
    row_bytes = c * hw * x_itemsize
    w_bytes = c * np_ * w_itemsize

    bn = _pick_bn(n, row_bytes, np_, w_bytes)
    grid = (pl.cdiv(n, bn),)                      # partial tail block; no jnp.pad of x

    # Free reshapes only (both layouts are contiguous along the flattened spatial dim).
    if channels_last:
        x_rows = x.reshape(n, hw, c)              # C on lanes
        kernel = _head_kernel_nhwc
        act_spec = pl.BlockSpec((bn, hw, c), lambda i: (i, 0, 0))
    else:
        x_rows = x.reshape(n, c, hw)              # PyTorch-native layout, no transpose
        kernel = _head_kernel_nchw
        act_spec = pl.BlockSpec((bn, c, hw), lambda i: (i, 0, 0))
        # NOTE: if the upstream producer can emit NHWC, prefer channels_last=True
        # (denser lanes, VPU instead of XLU spatial reduce).

    out_dtype = jnp.promote_types(x.dtype, w_pad.dtype)

    # Explicit VMEM limit covering double-buffered act/out blocks + resident weights
    # (v5e default scoped limit is only 16 MiB); capped well below v7x's 64 MiB/TC.
    need = 2 * (bn * row_bytes // 1 + bn * np_ * 4) + 2 * (w_bytes + np_ * 4)
    vmem_limit = int(min(max(need + (2 << 20), 32 << 20), 56 << 20))

    cost = pl.CostEstimate(
        flops=2 * n * c * num_classes + n * c * hw,
        transcendentals=0,
        bytes_accessed=(n * c * hw * x_itemsize + w_bytes + np_ * 4
                        + n * np_ * jnp.dtype(out_dtype).itemsize),
    )

    out = pl.pallas_call(
        kernel,
        out_shape=jax.ShapeDtypeStruct((n, np_), out_dtype),
        grid=grid,
        in_specs=[
            act_spec,                                         # batch-tiled activations
            pl.BlockSpec((c, np_), lambda i: (0, 0)),         # weight: resident in VMEM
            pl.BlockSpec((1, np_), lambda i: (0, 0)),         # bias:   resident in VMEM
        ],
        out_specs=pl.BlockSpec((bn, np_), lambda i: (i, 0)),
        compiler_params=pltpu.CompilerParams(
            dimension_semantics=("parallel",),                # megacore shards batch tiles
            vmem_limit_bytes=vmem_limit,
        ),
        cost_estimate=cost,
    )(x_rows, w_pad, b_pad)

    return out[:, :num_classes]


# ----------------------------------------------------------------------------
if __name__ == "__main__":
    key = jax.random.PRNGKey(0)
    k_x, k_w, k_b = jax.random.split(key, 3)

    # Small shapes consistent with a ResNet head: batch=2, in_features=256, 8x8 feature map.
    N, C, H, W = 2, 256, 8, 8
    num_classes = 10

    x = jax.random.normal(k_x, (N, C, H, W), jnp.float32)               # NCHW, like PyTorch
    fc_w = jax.random.normal(k_w, (num_classes, C), jnp.float32) / jnp.sqrt(float(C))
    fc_b = 0.05 * jax.random.normal(k_b, (num_classes,), jnp.float32)

    # One-time param prep (would live at model init).
    w_pad, b_pad, nc = prepare_head_params(fc_w, fc_b)

    logits = resnet_head_forward(x, w_pad, b_pad, nc)
    logits = jax.block_until_ready(logits)

    assert logits.shape == (N, num_classes), logits.shape
    assert bool(jnp.all(jnp.isfinite(logits)))

    # Reference check against plain XLA (loose tolerance for MXU f32 rounding).
    ref = x.mean(axis=(2, 3)) @ fc_w.T + fc_b
    assert bool(jnp.max(jnp.abs(logits - ref)) < 1e-2), "mismatch vs reference (NCHW)"

    # Channels-last fast path (for producers that already emit NHWC) — same math.
    x_nhwc = jnp.transpose(x, (0, 2, 3, 1))
    logits_cl = jax.block_until_ready(
        resnet_head_forward(x_nhwc, w_pad, b_pad, nc, channels_last=True))
    assert bool(jnp.max(jnp.abs(logits_cl - ref)) < 1e-2), "mismatch vs reference (NHWC)"

    print("KERNEL_OK")
</pallas_src>

<mosaic_0001>
module attributes {stable_mosaic.version = 11 : i64} {
  func.func @_head_kernel_nchw(%arg0: i32, %arg1: memref<2x256x64xf32, #tpu.memory_space<vmem>>, %arg2: memref<256x128xf32, #tpu.memory_space<vmem>>, %arg3: memref<1x128xf32, #tpu.memory_space<vmem>>, %arg4: memref<2x128xf32, #tpu.memory_space<vmem>>) attributes {dimension_semantics = [#tpu.dimension_semantics<parallel>], iteration_bounds = array<i64: 1>, scalar_prefetch = 0 : i64, scratch_operands = 0 : i64, tpu.core_type = #tpu.core_type<tc>, window_params = [{transform_indices = @transform_0, window_bounds = array<i64: 2, 256, 64>}, {pipeline_mode = #tpu.pipeline_mode<synchronous>, transform_indices = @transform_1, window_bounds = array<i64: 256, 128>}, {pipeline_mode = #tpu.pipeline_mode<synchronous>, transform_indices = @transform_2, window_bounds = array<i64: 1, 128>}, {transform_indices = @transform_3, window_bounds = array<i64: 2, 128>}]} {
    %c0 = arith.constant 0 : index
    %c0_0 = arith.constant 0 : index
    %c0_1 = arith.constant 0 : index
    %0 = vector.load %arg1[%c0, %c0_0, %c0_1] : memref<2x256x64xf32, #tpu.memory_space<vmem>>, vector<2x256x64xf32>
    %cst = arith.constant dense<0.000000e+00> : vector<2x256xf32>
    %1 = vector.multi_reduction <add>, %0, %cst [2] : vector<2x256x64xf32> to vector<2x256xf32>
    %cst_2 = arith.constant 1.562500e-02 : f32
    %2 = vector.broadcast %cst_2 : f32 to vector<2x256xf32>
    %3 = arith.mulf %1, %2 : vector<2x256xf32>
    %c0_3 = arith.constant 0 : index
    %c0_4 = arith.constant 0 : index
    %4 = vector.load %arg2[%c0_3, %c0_4] : memref<256x128xf32, #tpu.memory_space<vmem>>, vector<256x128xf32>
    %cst_5 = arith.constant dense<0.000000e+00> : vector<2x128xf32>
    %5 = tpu.matmul %3, %4, %cst_5 {dimension_numbers = #tpu.dot_dimension_numbers<[1], [0], [0], [1], [0, 0, 1, 1], [], []>} : vector<2x256xf32>, vector<256x128xf32>, vector<2x128xf32> -> vector<2x128xf32>
    %c0_6 = arith.constant 0 : index
    %c0_7 = arith.constant 0 : index
    %6 = vector.load %arg3[%c0_6, %c0_7] : memref<1x128xf32, #tpu.memory_space<vmem>>, vector<1x128xf32>
    %7 = vector.broadcast %6 : vector<1x128xf32> to vector<2x128xf32>
    %8 = arith.addf %5, %7 : vector<2x128xf32>
    %c0_8 = arith.constant 0 : index
    %c0_9 = arith.constant 0 : index
    %9 = vector.load %arg4[%c0_8, %c0_9] : memref<2x128xf32, #tpu.memory_space<vmem>>, vector<2x128xf32>
    tpu.vector_store %arg4[%c0_8, %c0_9], %8 {strides = array<i32>} : memref<2x128xf32, #tpu.memory_space<vmem>>, vector<2x128xf32>,
    return
  }
  func.func @transform_0(%arg0: i32) -> (i32, i32, i32) {
    %c0_i32 = arith.constant 0 : i32
    %c0_i32_0 = arith.constant 0 : i32
    %c0_i32_1 = arith.constant 0 : i32
    return %arg0, %c0_i32, %c0_i32_0 : i32, i32, i32
  }
  func.func @transform_1(%arg0: i32) -> (i32, i32) {
    %c0_i32 = arith.constant 0 : i32
    %c0_i32_0 = arith.constant 0 : i32
    %c0_i32_1 = arith.constant 0 : i32
    return %c0_i32, %c0_i32_0 : i32, i32
  }
  func.func @transform_2(%arg0: i32) -> (i32, i32) {
    %c0_i32 = arith.constant 0 : i32
    %c0_i32_0 = arith.constant 0 : i32
    %c0_i32_1 = arith.constant 0 : i32
    return %c0_i32, %c0_i32_0 : i32, i32
  }
  func.func @transform_3(%arg0: i32) -> (i32, i32) {
    %c0_i32 = arith.constant 0 : i32
    %c0_i32_0 = arith.constant 0 : i32
    return %arg0, %c0_i32 : i32, i32
  }
}

</mosaic_0001>

<llo_original>
// kernel: tpu_custom_call.1
$region0: #{tpu_custom_call.1}
  #allocation0 [shape = 'u32[]', space=smem, size = 0x4, offset = 0x4, fixed_abs, tag = 'smem constant byte address 0x4 - core index']
  #allocation1 [shape = 'u32[144,128]{1,0:T(1,128)}', space=vmem, size = 0x12000, scoped, tag = 'internal scratch']
  %s0 = inlined_call_operand.vmem [shape: f32[2,256,64], index: 0, kind: input, shape index: {}]
  %s1 = inlined_call_operand.vmem [shape: f32[256,128], index: 1, kind: input, shape index: {}]
  %s2 = inlined_call_operand.vmem [shape: f32[1,128], index: 2, kind: input, shape index: {}]
  %s3 = inlined_call_operand.hbm [shape: f32[2,128], index: 3, kind: output, shape index: {}]
  %s4 = sld [smem:[#allocation0]]
  $region22: #{tpu_custom_call.1} parent=0
    _
  %s6 = ssub.s32 1, %s4
  %s7 = scalar_select 0, %s6, %s4
  $region1: #{tpu_custom_call.1} parent=0
    #allocation2 [shape = 'u8[1024]{0}', space=vmem, size = 0x400, scoped, tag = 'output window, operand 0, single buffered']
    #allocation3 [shape = 's32[1]{0}', space=sflag, size = 0x4, scoped, tag = 'scoped memory for tpu_custom_call.1']
    %8 = vsyncpa [#allocation3], 0
    // Predicated region
    $region2: #{tpu_custom_call.1} parent=1 // pred_check
      _
    $region3: #{tpu_custom_call.1} parent=1 // pred_check_branch
      %10 = sbr.rel (0) target = $region5
    $region4: #{tpu_custom_call.1} parent=1 // pred_region
      _
    $region5: #{tpu_custom_call.1} parent=1 // pred_fallthru
      _
    // Predicated region
    $region6: #{tpu_custom_call.1} parent=1 // pred_check
      _
    $region7: #{tpu_custom_call.1} parent=1 // pred_check_branch
      %12 = sbr.rel (0) target = $region9
    $region8: #{tpu_custom_call.1} parent=1 // pred_region
      _
    $region9: #{tpu_custom_call.1} parent=1 // pred_fallthru
      _
    // Predicated region
    $region10: #{tpu_custom_call.1} parent=1 // pred_check
      _
    $region11: #{tpu_custom_call.1} parent=1 // pred_check_branch
      %14 = sbr.rel (0) target = $region13
    $region12: #{tpu_custom_call.1} parent=1 // pred_region
      _
    $region13: #{tpu_custom_call.1} parent=1 // pred_fallthru
      _
    %v15 = vld [vmem:[%s0] sm:$0xff]
    %v16 = vld [vmem:[%s0 + $0x8] sm:$0xff]
    %v17 = vld [vmem:[%s0 + $0x10] sm:$0xff]
    %v18 = vld [vmem:[%s0 + $0x18] sm:$0xff]
    %v19 = vld [vmem:[%s0 + $0x20] sm:$0xff]
    %v20 = vld [vmem:[%s0 + $0x28] sm:$0xff]
    %v21 = vld [vmem:[%s0 + $0x30] sm:$0xff]
    %v22 = vld [vmem:[%s0 + $0x38] sm:$0xff]
    %v23 = vld [vmem:[%s0 + $0x40] sm:$0xff]
    %v24 = vld [vmem:[%s0 + $0x48] sm:$0xff]
    %v25 = vld [vmem:[%s0 + $0x50] sm:$0xff]
    %v26 = vld [vmem:[%s0 + $0x58] sm:$0xff]
    %v27 = vld [vmem:[%s0 + $0x60] sm:$0xff]
    %v28 = vld [vmem:[%s0 + $0x68] sm:$0xff]
    %v29 = vld [vmem:[%s0 + $0x70] sm:$0xff]
    %v30 = vld [vmem:[%s0 + $0x78] sm:$0xff]
    %v31 = vld [vmem:[%s0 + $0x80] sm:$0xff]
    %v32 = vld [vmem:[%s0 + $0x88] sm:$0xff]
    %v33 = vld [vmem:[%s0 + $0x90] sm:$0xff]
    %v34 = vld [vmem:[%s0 + $0x98] sm:$0xff]
    %v35 = vld [vmem:[%s0 + $0xa0] sm:$0xff]
    %v36 = vld [vmem:[%s0 + $0xa8] sm:$0xff]
    %v37 = vld [vmem:[%s0 + $0xb0] sm:$0xff]
    %v38 = vld [vmem:[%s0 + $0xb8] sm:$0xff]
    %v39 = vld [vmem:[%s0 + $0xc0] sm:$0xff]
    %v40 = vld [vmem:[%s0 + $0xc8] sm:$0xff]
    %v41 = vld [vmem:[%s0 + $0xd0] sm:$0xff]
    %v42 = vld [vmem:[%s0 + $0xd8] sm:$0xff]
    %v43 = vld [vmem:[%s0 + $0xe0] sm:$0xff]
    %v44 = vld [vmem:[%s0 + $0xe8] sm:$0xff]
    %v45 = vld [vmem:[%s0 + $0xf0] sm:$0xff]
    %v46 = vld [vmem:[%s0 + $0xf8] sm:$0xff]
    %v47 = vld [vmem:[%s0 + $0x100] sm:$0xff]
    %v48 = vld [vmem:[%s0 + $0x108] sm:$0xff]
    %v49 = vld [vmem:[%s0 + $0x110] sm:$0xff]
    %v50 = vld [vmem:[%s0 + $0x118] sm:$0xff]
    %v51 = vld [vmem:[%s0 + $0x120] sm:$0xff]
    %v52 = vld [vmem:[%s0 + $0x128] sm:$0xff]
    %v53 = vld [vmem:[%s0 + $0x130] sm:$0xff]
    %v54 = vld [vmem:[%s0 + $0x138] sm:$0xff]
    %v55 = vld [vmem:[%s0 + $0x140] sm:$0xff]
    %v56 = vld [vmem:[%s0 + $0x148] sm:$0xff]
    %v57 = vld [vmem:[%s0 + $0x150] sm:$0xff]
    %v58 = vld [vmem:[%s0 + $0x158] sm:$0xff]
    %v59 = vld [vmem:[%s0 + $0x160] sm:$0xff]
    %v60 = vld [vmem:[%s0 + $0x168] sm:$0xff]
    %v61 = vld [vmem:[%s0 + $0x170] sm:$0xff]
    %v62 = vld [vmem:[%s0 + $0x178] sm:$0xff]
    %v63 = vld [vmem:[%s0 + $0x180] sm:$0xff]
    %v64 = vld [vmem:[%s0 + $0x188] sm:$0xff]
    %v65 = vld [vmem:[%s0 + $0x190] sm:$0xff]
    %v66 = vld [vmem:[%s0 + $0x198] sm:$0xff]
    %v67 = vld [vmem:[%s0 + $0x1a0] sm:$0xff]
    %v68 = vld [vmem:[%s0 + $0x1a8] sm:$0xff]
    %v69 = vld [vmem:[%s0 + $0x1b0] sm:$0xff]
    %v70 = vld [vmem:[%s0 + $0x1b8] sm:$0xff]
    %v71 = vld [vmem:[%s0 + $0x1c0] sm:$0xff]
    %v72 = vld [vmem:[%s0 + $0x1c8] sm:$0xff]
    %v73 = vld [vmem:[%s0 + $0x1d0] sm:$0xff]
    %v74 = vld [vmem:[%s0 + $0x1d8] sm:$0xff]
    %v75 = vld [vmem:[%s0 + $0x1e0] sm:$0xff]
    %v76 = vld [vmem:[%s0 + $0x1e8] sm:$0xff]
    %v77 = vld [vmem:[%s0 + $0x1f0] sm:$0xff]
    %v78 = vld [vmem:[%s0 + $0x1f8] sm:$0xff]
    %vm79 = vcmask 523264
    %v80 = vsel %vm79, %v15, 0.0
    %81 = vadd.xlane.f32.xlu0 %v80
    %v82 = vpop.xlane.xlu0 %81
    %v83 = vsel %vm79, %v16, 0.0
    %84 = vadd.xlane.f32.xlu0 %v83
    %v85 = vpop.xlane.xlu0 %84
    %v86 = vsel %vm79, %v17, 0.0
    %87 = vadd.xlane.f32.xlu0 %v86
    %v88 = vpop.xlane.xlu0 %87
    %v89 = vsel %vm79, %v18, 0.0
    %90 = vadd.xlane.f32.xlu0 %v89
    %v91 = vpop.xlane.xlu0 %90
    %v92 = vsel %vm79, %v19, 0.0
    %93 = vadd.xlane.f32.xlu0 %v92
    %v94 = vpop.xlane.xlu0 %93
    %v95 = vsel %vm79, %v20, 0.0
    %96 = vadd.xlane.f32.xlu0 %v95
    %v97 = vpop.xlane.xlu0 %96
    %v98 = vsel %vm79, %v21, 0.0
    %99 = vadd.xlane.f32.xlu0 %v98
    %v100 = vpop.xlane.xlu0 %99
    %v101 = vsel %vm79, %v22, 0.0
    %102 = vadd.xlane.f32.xlu0 %v101
    %v103 = vpop.xlane.xlu0 %102
    %v104 = vsel %vm79, %v23, 0.0
    %105 = vadd.xlane.f32.xlu0 %v104
    %v106 = vpop.xlane.xlu0 %105
    %v107 = vsel %vm79, %v24, 0.0
    %108 = vadd.xlane.f32.xlu0 %v107
    %v109 = vpop.xlane.xlu0 %108
    %v110 = vsel %vm79, %v25, 0.0
    %111 = vadd.xlane.f32.xlu0 %v110
    %v112 = vpop.xlane.xlu0 %111
    %v113 = vsel %vm79, %v26, 0.0
    %114 = vadd.xlane.f32.xlu0 %v113
    %v115 = vpop.xlane.xlu0 %114
    %v116 = vsel %vm79, %v27, 0.0
    %117 = vadd.xlane.f32.xlu0 %v116
    %v118 = vpop.xlane.xlu0 %117
    %v119 = vsel %vm79, %v28, 0.0
    %120 = vadd.xlane.f32.xlu0 %v119
    %v121 = vpop.xlane.xlu0 %120
    %v122 = vsel %vm79, %v29, 0.0
    %123 = vadd.xlane.f32.xlu0 %v122
    %v124 = vpop.xlane.xlu0 %123
    %v125 = vsel %vm79, %v30, 0.0
    %126 = vadd.xlane.f32.xlu0 %v125
    %v127 = vpop.xlane.xlu0 %126
    %v128 = vsel %vm79, %v31, 0.0
    %129 = vadd.xlane.f32.xlu0 %v128
    %v130 = vpop.xlane.xlu0 %129
    %v131 = vsel %vm79, %v32, 0.0
    %132 = vadd.xlane.f32.xlu0 %v131
    %v133 = vpop.xlane.xlu0 %132
    %v134 = vsel %vm79, %v33, 0.0
    %135 = vadd.xlane.f32.xlu0 %v134
    %v136 = vpop.xlane.xlu0 %135
    %v137 = vsel %vm79, %v34, 0.0
    %138 = vadd.xlane.f32.xlu0 %v137
    %v139 = vpop.xlane.xlu0 %138
    %v140 = vsel %vm79, %v35, 0.0
    %141 = vadd.xlane.f32.xlu0 %v140
    %v142 = vpop.xlane.xlu0 %141
    %v143 = vsel %vm79, %v36, 0.0
    %144 = vadd.xlane.f32.xlu0 %v143
    %v145 = vpop.xlane.xlu0 %144
    %v146 = vsel %vm79, %v37, 0.0
    %147 = vadd.xlane.f32.xlu0 %v146
    %v148 = vpop.xlane.xlu0 %147
    %v149 = vsel %vm79, %v38, 0.0
    %150 = vadd.xlane.f32.xlu0 %v149
    %v151 = vpop.xlane.xlu0 %150
    %v152 = vsel %vm79, %v39, 0.0
    %153 = vadd.xlane.f32.xlu0 %v152
    %v154 = vpop.xlane.xlu0 %153
    %v155 = vsel %vm79, %v40, 0.0
    %156 = vadd.xlane.f32.xlu0 %v155
    %v157 = vpop.xlane.xlu0 %156
    %v158 = vsel %vm79, %v41, 0.0
    %159 = vadd.xlane.f32.xlu0 %v158
    %v160 = vpop.xlane.xlu0 %159
    %v161 = vsel %vm79, %v42, 0.0
    %162 = vadd.xlane.f32.xlu0 %v161
    %v163 = vpop.xlane.xlu0 %162
    %v164 = vsel %vm79, %v43, 0.0
    %165 = vadd.xlane.f32.xlu0 %v164
    %v166 = vpop.xlane.xlu0 %165
    %v167 = vsel %vm79, %v44, 0.0
    %168 = vadd.xlane.f32.xlu0 %v167
    %v169 = vpop.xlane.xlu0 %168
    %v170 = vsel %vm79, %v45, 0.0
    %171 = vadd.xlane.f32.xlu0 %v170
    %v172 = vpop.xlane.xlu0 %171
    %v173 = vsel %vm79, %v46, 0.0
    %174 = vadd.xlane.f32.xlu0 %v173
    %v175 = vpop.xlane.xlu0 %174
    %v176 = vsel %vm79, %v47, 0.0
    %177 = vadd.xlane.f32.xlu0 %v176
    %v178 = vpop.xlane.xlu0 %177
    %v179 = vsel %vm79, %v48, 0.0
    %180 = vadd.xlane.f32.xlu0 %v179
    %v181 = vpop.xlane.xlu0 %180
    %v182 = vsel %vm79, %v49, 0.0
    %183 = vadd.xlane.f32.xlu0 %v182
    %v184 = vpop.xlane.xlu0 %183
    %v185 = vsel %vm79, %v50, 0.0
    %186 = vadd.xlane.f32.xlu0 %v185
    %v187 = vpop.xlane.xlu0 %186
    %v188 = vsel %vm79, %v51, 0.0
    %189 = vadd.xlane.f32.xlu0 %v188
    %v190 = vpop.xlane.xlu0 %189
    %v191 = vsel %vm79, %v52, 0.0
    %192 = vadd.xlane.f32.xlu0 %v191
    %v193 = vpop.xlane.xlu0 %192
    %v194 = vsel %vm79, %v53, 0.0
    %195 = vadd.xlane.f32.xlu0 %v194
    %v196 = vpop.xlane.xlu0 %195
    %v197 = vsel %vm79, %v54, 0.0
    %198 = vadd.xlane.f32.xlu0 %v197
    %v199 = vpop.xlane.xlu0 %198
    %v200 = vsel %vm79, %v55, 0.0
    %201 = vadd.xlane.f32.xlu0 %v200
    %v202 = vpop.xlane.xlu0 %201
    %v203 = vsel %vm79, %v56, 0.0
    %204 = vadd.xlane.f32.xlu0 %v203
    %v205 = vpop.xlane.xlu0 %204
    %v206 = vsel %vm79, %v57, 0.0
    %207 = vadd.xlane.f32.xlu0 %v206
    %v208 = vpop.xlane.xlu0 %207
    %v209 = vsel %vm79, %v58, 0.0
    %210 = vadd.xlane.f32.xlu0 %v209
    %v211 = vpop.xlane.xlu0 %210
    %v212 = vsel %vm79, %v59, 0.0
    %213 = vadd.xlane.f32.xlu0 %v212
    %v214 = vpop.xlane.xlu0 %213
    %v215 = vsel %vm79, %v60, 0.0
    %216 = vadd.xlane.f32.xlu0 %v215
    %v217 = vpop.xlane.xlu0 %216
    %v218 = vsel %vm79, %v61, 0.0
    %219 = vadd.xlane.f32.xlu0 %v218
    %v220 = vpop.xlane.xlu0 %219
    %v221 = vsel %vm79, %v62, 0.0
    %222 = vadd.xlane.f32.xlu0 %v221
    %v223 = vpop.xlane.xlu0 %222
    %v224 = vsel %vm79, %v63, 0.0
    %225 = vadd.xlane.f32.xlu0 %v224
    %v226 = vpop.xlane.xlu0 %225
    %v227 = vsel %vm79, %v64, 0.0
    %228 = vadd.xlane.f32.xlu0 %v227
    %v229 = vpop.xlane.xlu0 %228
    %v230 = vsel %vm79, %v65, 0.0
    %231 = vadd.xlane.f32.xlu0 %v230
    %v232 = vpop.xlane.xlu0 %231
    %v233 = vsel %vm79, %v66, 0.0
    %234 = vadd.xlane.f32.xlu0 %v233
    %v235 = vpop.xlane.xlu0 %234
    %v236 = vsel %vm79, %v67, 0.0
    %237 = vadd.xlane.f32.xlu0 %v236
    %v238 = vpop.xlane.xlu0 %237
    %v239 = vsel %vm79, %v68, 0.0
    %240 = vadd.xlane.f32.xlu0 %v239
    %v241 = vpop.xlane.xlu0 %240
    %v242 = vsel %vm79, %v69, 0.0
    %243 = vadd.xlane.f32.xlu0 %v242
    %v244 = vpop.xlane.xlu0 %243
    %v245 = vsel %vm79, %v70, 0.0
    %246 = vadd.xlane.f32.xlu0 %v245
    %v247 = vpop.xlane.xlu0 %246
    %v248 = vsel %vm79, %v71, 0.0
    %249 = vadd.xlane.f32.xlu0 %v248
    %v250 = vpop.xlane.xlu0 %249
    %v251 = vsel %vm79, %v72, 0.0
    %252 = vadd.xlane.f32.xlu0 %v251
    %v253 = vpop.xlane.xlu0 %252
    %v254 = vsel %vm79, %v73, 0.0
    %255 = vadd.xlane.f32.xlu0 %v254
    %v256 = vpop.xlane.xlu0 %255
    %v257 = vsel %vm79, %v74, 0.0
    %258 = vadd.xlane.f32.xlu0 %v257
    %v259 = vpop.xlane.xlu0 %258
    %v260 = vsel %vm79, %v75, 0.0
    %261 = vadd.xlane.f32.xlu0 %v260
    %v262 = vpop.xlane.xlu0 %261
    %v263 = vsel %vm79, %v76, 0.0
    %264 = vadd.xlane.f32.xlu0 %v263
    %v265 = vpop.xlane.xlu0 %264
    %v266 = vsel %vm79, %v77, 0.0
    %267 = vadd.xlane.f32.xlu0 %v266
    %v268 = vpop.xlane.xlu0 %267
    %v269 = vsel %vm79, %v78, 0.0
    %270 = vadd.xlane.f32.xlu0 %v269
    %v271 = vpop.xlane.xlu0 %270
    %v272 = vmul.f32 %v82, 0.015625
    %v273 = vmul.f32 %v85, 0.015625
    %v274 = vmul.f32 %v88, 0.015625
    %v275 = vmul.f32 %v91, 0.015625
    %v276 = vmul.f32 %v94, 0.015625
    %v277 = vmul.f32 %v97, 0.015625
    %v278 = vmul.f32 %v100, 0.015625
    %v279 = vmul.f32 %v103, 0.015625
    %v280 = vmul.f32 %v106, 0.015625
    %v281 = vmul.f32 %v109, 0.015625
    %v282 = vmul.f32 %v112, 0.015625
    %v283 = vmul.f32 %v115, 0.015625
    %v284 = vmul.f32 %v118, 0.015625
    %v285 = vmul.f32 %v121, 0.015625
    %v286 = vmul.f32 %v124, 0.015625
    %v287 = vmul.f32 %v127, 0.015625
    %v288 = vmul.f32 %v130, 0.015625
    %v289 = vmul.f32 %v133, 0.015625
    %v290 = vmul.f32 %v136, 0.015625
    %v291 = vmul.f32 %v139, 0.015625
    %v292 = vmul.f32 %v142, 0.015625
    %v293 = vmul.f32 %v145, 0.015625
    %v294 = vmul.f32 %v148, 0.015625
    %v295 = vmul.f32 %v151, 0.015625
    %v296 = vmul.f32 %v154, 0.015625
    %v297 = vmul.f32 %v157, 0.015625
    %v298 = vmul.f32 %v160, 0.015625
    %v299 = vmul.f32 %v163, 0.015625
    %v300 = vmul.f32 %v166, 0.015625
    %v301 = vmul.f32 %v169, 0.015625
    %v302 = vmul.f32 %v172, 0.015625
    %v303 = vmul.f32 %v175, 0.015625
    %v304 = vmul.f32 %v178, 0.015625
    %v305 = vmul.f32 %v181, 0.015625
    %v306 = vmul.f32 %v184, 0.015625
    %v307 = vmul.f32 %v187, 0.015625
    %v308 = vmul.f32 %v190, 0.015625
    %v309 = vmul.f32 %v193, 0.015625
    %v310 = vmul.f32 %v196, 0.015625
    %v311 = vmul.f32 %v199, 0.015625
    %v312 = vmul.f32 %v202, 0.015625
    %v313 = vmul.f32 %v205, 0.015625
    %v314 = vmul.f32 %v208, 0.015625
    %v315 = vmul.f32 %v211, 0.015625
    %v316 = vmul.f32 %v214, 0.015625
    %v317 = vmul.f32 %v217, 0.015625
    %v318 = vmul.f32 %v220, 0.015625
    %v319 = vmul.f32 %v223, 0.015625
    %v320 = vmul.f32 %v226, 0.015625
    %v321 = vmul.f32 %v229, 0.015625
    %v322 = vmul.f32 %v232, 0.015625
    %v323 = vmul.f32 %v235, 0.015625
    %v324 = vmul.f32 %v238, 0.015625
    %v325 = vmul.f32 %v241, 0.015625
    %v326 = vmul.f32 %v244, 0.015625
    %v327 = vmul.f32 %v247, 0.015625
    %v328 = vmul.f32 %v250, 0.015625
    %v329 = vmul.f32 %v253, 0.015625
    %v330 = vmul.f32 %v256, 0.015625
    %v331 = vmul.f32 %v259, 0.015625
    %v332 = vmul.f32 %v262, 0.015625
    %v333 = vmul.f32 %v265, 0.015625
    %v334 = vmul.f32 %v268, 0.015625
    %v335 = vmul.f32 %v271, 0.015625
    %v336 = vld [vmem:[%s1] sm:$0xff]
    %v337 = vld [vmem:[%s1 + $0x8] sm:$0xff]
    %v338 = vld [vmem:[%s1 + $0x10] sm:$0xff]
    %v339 = vld [vmem:[%s1 + $0x18] sm:$0xff]
    %v340 = vld [vmem:[%s1 + $0x20] sm:$0xff]
    %v341 = vld [vmem:[%s1 + $0x28] sm:$0xff]
    %v342 = vld [vmem:[%s1 + $0x30] sm:$0xff]
    %v343 = vld [vmem:[%s1 + $0x38] sm:$0xff]
    %v344 = vld [vmem:[%s1 + $0x40] sm:$0xff]
    %v345 = vld [vmem:[%s1 + $0x48] sm:$0xff]
    %v346 = vld [vmem:[%s1 + $0x50] sm:$0xff]
    %v347 = vld [vmem:[%s1 + $0x58] sm:$0xff]
    %v348 = vld [vmem:[%s1 + $0x60] sm:$0xff]
    %v349 = vld [vmem:[%s1 + $0x68] sm:$0xff]
    %v350 = vld [vmem:[%s1 + $0x70] sm:$0xff]
    %v351 = vld [vmem:[%s1 + $0x78] sm:$0xff]
    %v352 = vld [vmem:[%s1 + $0x80] sm:$0xff]
    %v353 = vld [vmem:[%s1 + $0x88] sm:$0xff]
    %v354 = vld [vmem:[%s1 + $0x90] sm:$0xff]
    %v355 = vld [vmem:[%s1 + $0x98] sm:$0xff]
    %v356 = vld [vmem:[%s1 + $0xa0] sm:$0xff]
    %v357 = vld [vmem:[%s1 + $0xa8] sm:$0xff]
    %v358 = vld [vmem:[%s1 + $0xb0] sm:$0xff]
    %v359 = vld [vmem:[%s1 + $0xb8] sm:$0xff]
    %v360 = vld [vmem:[%s1 + $0xc0] sm:$0xff]
    %v361 = vld [vmem:[%s1 + $0xc8] sm:$0xff]
    %v362 = vld [vmem:[%s1 + $0xd0] sm:$0xff]
    %v363 = vld [vmem:[%s1 + $0xd8] sm:$0xff]
    %v364 = vld [vmem:[%s1 + $0xe0] sm:$0xff]
    %v365 = vld [vmem:[%s1 + $0xe8] sm:$0xff]
    %v366 = vld [vmem:[%s1 + $0xf0] sm:$0xff]
    %v367 = vld [vmem:[%s1 + $0xf8] sm:$0xff]
    %v368 = vld [vmem:[%s2] sm:$0x1]
    %v370 = vlaneseq
    %v371 = vshrl.u32 %v370, 7
    %v372 = vsub.s32 0, %v371
    %v373 = vrot.slane %v368, %v372
    %v439 = vlaneseq
    %v440 = vand.u32 %v439, 127
    %v441 = vlaneseq
    %v442 = vshrl.u32 %v441, 7
    %v443 = vsub.s32 %v440, %v442
    %v444 = vrot.slane %v272, %v443
    %v445 = vadd.s32 %v440, 4294967288
    %v446 = vlaneseq
    %v447 = vshrl.u32 %v446, 7
    %v448 = vsub.s32 %v445, %v447
    %v449 = vrot.slane %v273, %v448
    %vm450 = vcmask 130112
    %v451 = vsel %vm450, %v449, %v444
    %v452 = vadd.s32 %v440, 4294967280
    %v453 = vlaneseq
    %v454 = vshrl.u32 %v453, 7
    %v455 = vsub.s32 %v452, %v454
    %v456 = vrot.slane %v274, %v455
    %vm457 = vcmask 195712
    %v458 = vsel %vm457, %v456, %v451
    %v459 = vadd.s32 %v440, 4294967272
    %v460 = vlaneseq
    %v461 = vshrl.u32 %v460, 7
    %v462 = vsub.s32 %v459, %v461
    %v463 = vrot.slane %v275, %v462
    %vm464 = vcmask 261312
    %v465 = vsel %vm464, %v463, %v458
    %v466 = vadd.s32 %v440, 4294967264
    %v467 = vlaneseq
    %v468 = vshrl.u32 %v467, 7
    %v469 = vsub.s32 %v466, %v468
    %v470 = vrot.slane %v276, %v469
    %vm471 = vcmask 326912
    %v472 = vsel %vm471, %v470, %v465
    %v473 = vadd.s32 %v440, 4294967256
    %v474 = vlaneseq
    %v475 = vshrl.u32 %v474, 7
    %v476 = vsub.s32 %v473, %v475
    %v477 = vrot.slane %v277, %v476
    %vm478 = vcmask 392512
    %v479 = vsel %vm478, %v477, %v472
    %v480 = vadd.s32 %v440, 4294967248
    %v481 = vlaneseq
    %v482 = vshrl.u32 %v481, 7
    %v483 = vsub.s32 %v480, %v482
    %v484 = vrot.slane %v278, %v483
    %vm485 = vcmask 458112
    %v486 = vsel %vm485, %v484, %v479
    %v487 = vadd.s32 %v440, 4294967240
    %v488 = vlaneseq
    %v489 = vshrl.u32 %v488, 7
    %v490 = vsub.s32 %v487, %v489
    %v491 = vrot.slane %v279, %v490
    %vm492 = vcmask 523712
    %v493 = vsel %vm492, %v491, %v486
    %v494 = vadd.s32 %v440, 4294967232
    %v495 = vlaneseq
    %v496 = vshrl.u32 %v495, 7
    %v497 = vsub.s32 %v494, %v496
    %v498 = vrot.slane %v280, %v497
    %vm499 = vcmask 589312
    %v500 = vsel %vm499, %v498, %v493
    %v501 = vadd.s32 %v440, 4294967224
    %v502 = vlaneseq
    %v503 = vshrl.u32 %v502, 7
    %v504 = vsub.s32 %v501, %v503
    %v505 = vrot.slane %v281, %v504
    %vm506 = vcmask 654912
    %v507 = vsel %vm506, %v505, %v500
    %v508 = vadd.s32 %v440, 4294967216
    %v509 = vlaneseq
    %v510 = vshrl.u32 %v509, 7
    %v511 = vsub.s32 %v508, %v510
    %v512 = vrot.slane %v282, %v511
    %vm513 = vcmask 720512
    %v514 = vsel %vm513, %v512, %v507
    %v515 = vadd.s32 %v440, 4294967208
    %v516 = vlaneseq
    %v517 = vshrl.u32 %v516, 7
    %v518 = vsub.s32 %v515, %v517
    %v519 = vrot.slane %v283, %v518
    %vm520 = vcmask 786112
    %v521 = vsel %vm520, %v519, %v514
    %v522 = vadd.s32 %v440, 4294967200
    %v523 = vlaneseq
    %v524 = vshrl.u32 %v523, 7
    %v525 = vsub.s32 %v522, %v524
    %v526 = vrot.slane %v284, %v525
    %vm527 = vcmask 851712
    %v528 = vsel %vm527, %v526, %v521
    %v529 = vadd.s32 %v440, 4294967192
    %v530 = vlaneseq
    %v531 = vshrl.u32 %v530, 7
    %v532 = vsub.s32 %v529, %v531
    %v533 = vrot.slane %v285, %v532
    %vm534 = vcmask 917312
    %v535 = vsel %vm534, %v533, %v528
    %v536 = vadd.s32 %v440, 4294967184
    %v537 = vlaneseq
    %v538 = vshrl.u32 %v537, 7
    %v539 = vsub.s32 %v536, %v538
    %v540 = vrot.slane %v286, %v539
    %vm541 = vcmask 982912
    %v542 = vsel %vm541, %v540, %v535
    %v543 = vadd.s32 %v440, 4294967176
    %v544 = vlaneseq
    %v545 = vshrl.u32 %v544, 7
    %v546 = vsub.s32 %v543, %v545
    %v547 = vrot.slane %v287, %v546
    %vm548 = vcmask 1048512
    %v549 = vsel %vm548, %v547, %v542
    %v550 = vlaneseq
    %v551 = vshrl.u32 %v550, 7
    %v552 = vsub.s32 %v440, %v551
    %v553 = vrot.slane %v288, %v552
    %v554 = vlaneseq
    %v555 = vshrl.u32 %v554, 7
    %v556 = vsub.s32 %v445, %v555
    %v557 = vrot.slane %v289, %v556
    %v558 = vsel %vm450, %v557, %v553
    %v559 = vlaneseq
    %v560 = vshrl.u32 %v559, 7
    %v561 = vsub.s32 %v452, %v560
    %v562 = vrot.slane %v290, %v561
    %v563 = vsel %vm457, %v562, %v558
    %v564 = vlaneseq
    %v565 = vshrl.u32 %v564, 7
    %v566 = vsub.s32 %v459, %v565
    %v567 = vrot.slane %v291, %v566
    %v568 = vsel %vm464, %v567, %v563
    %v569 = vlaneseq
    %v570 = vshrl.u32 %v569, 7
    %v571 = vsub.s32 %v466, %v570
    %v572 = vrot.slane %v292, %v571
    %v573 = vsel %vm471, %v572, %v568
    %v574 = vlaneseq
    %v575 = vshrl.u32 %v574, 7
    %v576 = vsub.s32 %v473, %v575
    %v577 = vrot.slane %v293, %v576
    %v578 = vsel %vm478, %v577, %v573
    %v579 = vlaneseq
    %v580 = vshrl.u32 %v579, 7
    %v581 = vsub.s32 %v480, %v580
    %v582 = vrot.slane %v294, %v581
    %v583 = vsel %vm485, %v582, %v578
    %v584 = vlaneseq
    %v585 = vshrl.u32 %v584, 7
    %v586 = vsub.s32 %v487, %v585
    %v587 = vrot.slane %v295, %v586
    %v588 = vsel %vm492, %v587, %v583
    %v589 = vlaneseq
    %v590 = vshrl.u32 %v589, 7
    %v591 = vsub.s32 %v494, %v590
    %v592 = vrot.slane %v296, %v591
    %v593 = vsel %vm499, %v592, %v588
    %v594 = vlaneseq
    %v595 = vshrl.u32 %v594, 7
    %v596 = vsub.s32 %v501, %v595
    %v597 = vrot.slane %v297, %v596
    %v598 = vsel %vm506, %v597, %v593
    %v599 = vlaneseq
    %v600 = vshrl.u32 %v599, 7
    %v601 = vsub.s32 %v508, %v600
    %v602 = vrot.slane %v298, %v601
    %v603 = vsel %vm513, %v602, %v598
    %v604 = vlaneseq
    %v605 = vshrl.u32 %v604, 7
    %v606 = vsub.s32 %v515, %v605
    %v607 = vrot.slane %v299, %v606
    %v608 = vsel %vm520, %v607, %v603
    %v609 = vlaneseq
    %v610 = vshrl.u32 %v609, 7
    %v611 = vsub.s32 %v522, %v610
    %v612 = vrot.slane %v300, %v611
    %v613 = vsel %vm527, %v612, %v608
    %v614 = vlaneseq
    %v615 = vshrl.u32 %v614, 7
    %v616 = vsub.s32 %v529, %v615
    %v617 = vrot.slane %v301, %v616
    %v618 = vsel %vm534, %v617, %v613
    %v619 = vlaneseq
    %v620 = vshrl.u32 %v619, 7
    %v621 = vsub.s32 %v536, %v620
    %v622 = vrot.slane %v302, %v621
    %v623 = vsel %vm541, %v622, %v618
    %v624 = vlaneseq
    %v625 = vshrl.u32 %v624, 7
    %v626 = vsub.s32 %v543, %v625
    %v627 = vrot.slane %v303, %v626
    %v628 = vsel %vm548, %v627, %v623
    %v629 = vlaneseq
    %v630 = vshrl.u32 %v629, 7
    %v631 = vsub.s32 %v440, %v630
    %v632 = vrot.slane %v304, %v631
    %v633 = vlaneseq
    %v634 = vshrl.u32 %v633, 7
    %v635 = vsub.s32 %v445, %v634
    %v636 = vrot.slane %v305, %v635
    %v637 = vsel %vm450, %v636, %v632
    %v638 = vlaneseq
    %v639 = vshrl.u32 %v638, 7
    %v640 = vsub.s32 %v452, %v639
    %v641 = vrot.slane %v306, %v640
    %v642 = vsel %vm457, %v641, %v637
    %v643 = vlaneseq
    %v644 = vshrl.u32 %v643, 7
    %v645 = vsub.s32 %v459, %v644
    %v646 = vrot.slane %v307, %v645
    %v647 = vsel %vm464, %v646, %v642
    %v648 = vlaneseq
    %v649 = vshrl.u32 %v648, 7
    %v650 = vsub.s32 %v466, %v649
    %v651 = vrot.slane %v308, %v650
    %v652 = vsel %vm471, %v651, %v647
    %v653 = vlaneseq
    %v654 = vshrl.u32 %v653, 7
    %v655 = vsub.s32 %v473, %v654
    %v656 = vrot.slane %v309, %v655
    %v657 = vsel %vm478, %v656, %v652
    %v658 = vlaneseq
    %v659 = vshrl.u32 %v658, 7
    %v660 = vsub.s32 %v480, %v659
    %v661 = vrot.slane %v310, %v660
    %v662 = vsel %vm485, %v661, %v657
    %v663 = vlaneseq
    %v664 = vshrl.u32 %v663, 7
    %v665 = vsub.s32 %v487, %v664
    %v666 = vrot.slane %v311, %v665
    %v667 = vsel %vm492, %v666, %v662
    %v668 = vlaneseq
    %v669 = vshrl.u32 %v668, 7
    %v670 = vsub.s32 %v494, %v669
    %v671 = vrot.slane %v312, %v670
    %v672 = vsel %vm499, %v671, %v667
    %v673 = vlaneseq
    %v674 = vshrl.u32 %v673, 7
    %v675 = vsub.s32 %v501, %v674
    %v676 = vrot.slane %v313, %v675
    %v677 = vsel %vm506, %v676, %v672
    %v678 = vlaneseq
    %v679 = vshrl.u32 %v678, 7
    %v680 = vsub.s32 %v508, %v679
    %v681 = vrot.slane %v314, %v680
    %v682 = vsel %vm513, %v681, %v677
    %v683 = vlaneseq
    %v684 = vshrl.u32 %v683, 7
    %v685 = vsub.s32 %v515, %v684
    %v686 = vrot.slane %v315, %v685
    %v687 = vsel %vm520, %v686, %v682
    %v688 = vlaneseq
    %v689 = vshrl.u32 %v688, 7
    %v690 = vsub.s32 %v522, %v689
    %v691 = vrot.slane %v316, %v690
    %v692 = vsel %vm527, %v691, %v687
    %v693 = vlaneseq
    %v694 = vshrl.u32 %v693, 7
    %v695 = vsub.s32 %v529, %v694
    %v696 = vrot.slane %v317, %v695
    %v697 = vsel %vm534, %v696, %v692
    %v698 = vlaneseq
    %v699 = vshrl.u32 %v698, 7
    %v700 = vsub.s32 %v536, %v699
    %v701 = vrot.slane %v318, %v700
    %v702 = vsel %vm541, %v701, %v697
    %v703 = vlaneseq
    %v704 = vshrl.u32 %v703, 7
    %v705 = vsub.s32 %v543, %v704
    %v706 = vrot.slane %v319, %v705
    %v707 = vsel %vm548, %v706, %v702
    %v708 = vlaneseq
    %v709 = vshrl.u32 %v708, 7
    %v710 = vsub.s32 %v440, %v709
    %v711 = vrot.slane %v320, %v710
    %v712 = vlaneseq
    %v713 = vshrl.u32 %v712, 7
    %v714 = vsub.s32 %v445, %v713
    %v715 = vrot.slane %v321, %v714
    %v716 = vsel %vm450, %v715, %v711
    %v717 = vlaneseq
    %v718 = vshrl.u32 %v717, 7
    %v719 = vsub.s32 %v452, %v718
    %v720 = vrot.slane %v322, %v719
    %v721 = vsel %vm457, %v720, %v716
    %v722 = vlaneseq
    %v723 = vshrl.u32 %v722, 7
    %v724 = vsub.s32 %v459, %v723
    %v725 = vrot.slane %v323, %v724
    %v726 = vsel %vm464, %v725, %v721
    %v727 = vlaneseq
    %v728 = vshrl.u32 %v727, 7
    %v729 = vsub.s32 %v466, %v728
    %v730 = vrot.slane %v324, %v729
    %v731 = vsel %vm471, %v730, %v726
    %v732 = vlaneseq
    %v733 = vshrl.u32 %v732, 7
    %v734 = vsub.s32 %v473, %v733
    %v735 = vrot.slane %v325, %v734
    %v736 = vsel %vm478, %v735, %v731
    %v737 = vlaneseq
    %v738 = vshrl.u32 %v737, 7
    %v739 = vsub.s32 %v480, %v738
    %v740 = vrot.slane %v326, %v739
    %v741 = vsel %vm485, %v740, %v736
    %v742 = vlaneseq
    %v743 = vshrl.u32 %v742, 7
    %v744 = vsub.s32 %v487, %v743
    %v745 = vrot.slane %v327, %v744
    %v746 = vsel %vm492, %v745, %v741
    %v747 = vlaneseq
    %v748 = vshrl.u32 %v747, 7
    %v749 = vsub.s32 %v494, %v748
    %v750 = vrot.slane %v328, %v749
    %v751 = vsel %vm499, %v750, %v746
    %v752 = vlaneseq
    %v753 = vshrl.u32 %v752, 7
    %v754 = vsub.s32 %v501, %v753
    %v755 = vrot.slane %v329, %v754
    %v756 = vsel %vm506, %v755, %v751
    %v757 = vlaneseq
    %v758 = vshrl.u32 %v757, 7
    %v759 = vsub.s32 %v508, %v758
    %v760 = vrot.slane %v330, %v759
    %v761 = vsel %vm513, %v760, %v756
    %v762 = vlaneseq
    %v763 = vshrl.u32 %v762, 7
    %v764 = vsub.s32 %v515, %v763
    %v765 = vrot.slane %v331, %v764
    %v766 = vsel %vm520, %v765, %v761
    %v767 = vlaneseq
    %v768 = vshrl.u32 %v767, 7
    %v769 = vsub.s32 %v522, %v768
    %v770 = vrot.slane %v332, %v769
    %v771 = vsel %vm527, %v770, %v766
    %v772 = vlaneseq
    %v773 = vshrl.u32 %v772, 7
    %v774 = vsub.s32 %v529, %v773
    %v775 = vrot.slane %v333, %v774
    %v776 = vsel %vm534, %v775, %v771
    %v777 = vlaneseq
    %v778 = vshrl.u32 %v777, 7
    %v779 = vsub.s32 %v536, %v778
    %v780 = vrot.slane %v334, %v779
    %v781 = vsel %vm541, %v780, %v776
    %v782 = vlaneseq
    %v783 = vshrl.u32 %v782, 7
    %v784 = vsub.s32 %v543, %v783
    %v785 = vrot.slane %v335, %v784
    %v786 = vsel %vm548, %v785, %v781
    %vm787 = vcmask 1041409
    %v788 = vsel %vm787, %v707, %v549
    %v789 = vsel %vm787, %v786, %v628
    %792 = vmatprep.subr.mxu0 0.0
    %793 = vmatpush1.msra.mxu0 %v351
    %794 = vmatprep.subr.mxu0 0.0
    %795 = vmatpush1.msra.mxu0 %v350
    %796 = vmatprep.subr.mxu0 0.0
    %797 = vmatpush1.msra.mxu0 %v349
    %798 = vmatprep.subr.mxu0 0.0
    %799 = vmatpush1.msra.mxu0 %v348
    %800 = vmatprep.subr.mxu0 0.0
    %801 = vmatpush1.msra.mxu0 %v347
    %802 = vmatprep.subr.mxu0 0.0
    %803 = vmatpush1.msra.mxu0 %v346
    %804 = vmatprep.subr.mxu0 0.0
    %805 = vmatpush1.msra.mxu0 %v345
    %806 = vmatprep.subr.mxu0 0.0
    %807 = vmatpush1.msra.mxu0 %v344
    %808 = vmatprep.subr.mxu0 0.0
    %809 = vmatpush1.msra.mxu0 %v343
    %810 = vmatprep.subr.mxu0 0.0
    %811 = vmatpush1.msra.mxu0 %v342
    %812 = vmatprep.subr.mxu0 0.0
    %813 = vmatpush1.msra.mxu0 %v341
    %814 = vmatprep.subr.mxu0 0.0
    %815 = vmatpush1.msra.mxu0 %v340
    %816 = vmatprep.subr.mxu0 0.0
    %817 = vmatpush1.msra.mxu0 %v339
    %818 = vmatprep.subr.mxu0 0.0
    %819 = vmatpush1.msra.mxu0 %v338
    %820 = vmatprep.subr.mxu0 0.0
    %821 = vmatpush1.msra.mxu0 %v337
    %822 = vmatprep.subr.mxu0 0.0
    %823 = vmatpush1.msra.mxu0 %v336
    %824 = vmatprep.subr.mxu0 0.0
    %825 = vmatpush2.msra.mxu0 %v367
    %826 = vmatprep.subr.mxu0 0.0
    %827 = vmatpush2.msra.mxu0 %v366
    %828 = vmatprep.subr.mxu0 0.0
    %829 = vmatpush2.msra.mxu0 %v365
    %830 = vmatprep.subr.mxu0 0.0
    %831 = vmatpush2.msra.mxu0 %v364
    %832 = vmatprep.subr.mxu0 0.0
    %833 = vmatpush2.msra.mxu0 %v363
    %834 = vmatprep.subr.mxu0 0.0
    %835 = vmatpush2.msra.mxu0 %v362
    %836 = vmatprep.subr.mxu0 0.0
    %837 = vmatpush2.msra.mxu0 %v361
    %838 = vmatprep.subr.mxu0 0.0
    %839 = vmatpush2.msra.mxu0 %v360
    %840 = vmatprep.subr.mxu0 0.0
    %841 = vmatpush2.msra.mxu0 %v359
    %842 = vmatprep.subr.mxu0 0.0
    %843 = vmatpush2.msra.mxu0 %v358
    %844 = vmatprep.subr.mxu0 0.0
    %845 = vmatpush2.msra.mxu0 %v357
    %846 = vmatprep.subr.mxu0 0.0
    %847 = vmatpush2.msra.mxu0 %v356
    %848 = vmatprep.subr.mxu0 0.0
    %849 = vmatpush2.msra.mxu0 %v355
    %850 = vmatprep.subr.mxu0 0.0
    %851 = vmatpush2.msra.mxu0 %v354
    %852 = vmatprep.subr.mxu0 0.0
    %853 = vmatpush2.msra.mxu0 %v353
    %854 = vmatprep.subr.mxu0 0.0
    %855 = vmatpush2.msra.mxu0 %v352
    %856 = vmatprep.mubr.f32.mxu0 %v789
    %857 = vmatmul.mubr.f32.gmra.mxu0 %v788
    %v858 = vpop.f32.mrf.mxu0
    %v859 = vadd.f32 %v373, %v858
    %v860 = vpop.f32.mrf.mxu0
    %861 = vdwg.mxu0
    %862 = vst [vmem:[#allocation2] sm:$0x3] %v859
    // Predicated region
    $region14: #{tpu_custom_call.1} parent=1 // pred_check
      _
    $region15: #{tpu_custom_call.1} parent=1 // pred_check_branch
      %864 = sbr.rel (0) target = $region17
    $region16: #{tpu_custom_call.1} parent=1 // pred_region
      %s866 = ssub.s32 32, 32
      %867 = vsyncadd [#allocation3], %s866
      %s869 = sshll.u32 [#allocation2], 4
      %s870 = int_to_ptr.vmem [resolvable:$true] %s869
      %872 = dma.vmem_to_hbm [thread:$0]  %s870, 32, %s3, [#allocation3]
    $region17: #{tpu_custom_call.1} parent=1 // pred_fallthru
      _
    // Predicated region
    $region18: #{tpu_custom_call.1} parent=1 // pred_check
      _
    $region19: #{tpu_custom_call.1} parent=1 // pred_check_branch
      %874 = sbr.rel (0) target = $region21
    $region20: #{tpu_custom_call.1} parent=1 // pred_region
      %875 = dma.done [#allocation3], 32
    $region21: #{tpu_custom_call.1} parent=1 // pred_fallthru
      _
    %876 = vsyncpa [#allocation3], 1

</llo_original>
